<compile_context>
chip_gen: v7x
topology: tpu7x:2x2x1
jax: 0.10.0
libtpu: 0.0.40
codegen_flags: <defaults>
</compile_context>

<pallas_src>
import math

import jax
import jax.numpy as jnp
from jax.experimental import pallas as pl
from jax.experimental.pallas import tpu as pltpu


def _make_kernel(s: int):
    """Per-(feature-tile, batch) kernel for a given spatial size s (= isqrt(S))."""

    def kernel(x_ref, wt_ref, b_ref, o_ref):
        # x_ref : (1, S, H_in)          activations for one batch
        # wt_ref: (H_in, block_n)       pre-transposed weight column tile (VMEM-resident)
        # b_ref : (1, block_n)          bias tile
        # o_ref : (1, (s+2)^2, block_n) wrapped output tile
        x = x_ref[0]                                                  # (S, H_in)
        # Linear (torch semantics): x @ W.T, W.T formed once outside the kernel.
        y = jnp.dot(x, wt_ref[...], preferred_element_type=jnp.float32)
        y = y + b_ref[...].astype(jnp.float32)                        # bias add in f32
        y = y.astype(o_ref.dtype)                                     # narrow once, before halo dup

        # Toroidal wrap: assemble the whole wrapped tile from static slices of
        # y (flattened (s*s, block_n) row-major grid) and store it ONCE.
        # Output spatial rows are [s-1, 0..s-1, 0]; each wrapped row is
        # [y[r, s-1], y[r, 0..s-1], y[r, 0]].
        pieces = []
        for r in [s - 1] + list(range(s)) + [0]:
            lo = r * s
            pieces.append(y[lo + s - 1:lo + s])    # left halo  = last col of spatial row r
            pieces.append(y[lo:lo + s])            # interior   = cols 0..s-1
            pieces.append(y[lo:lo + 1])            # right halo = first col of spatial row r
        wrapped = jnp.concatenate(pieces, axis=0)  # ((s+2)^2, block_n)
        o_ref[0] = wrapped                         # single lane-dense, unmasked store

    return kernel


def _phys_vmem_bytes() -> int:
    try:
        return int(pltpu.get_tpu_info().vmem_capacity_bytes)
    except Exception:
        return 64 << 20            # conservative (v7x) fallback


def _pick_block_n(h_pad: int, S: int, H_in: int, new_S: int,
                  itemsize: int, phys_vmem: int) -> int:
    """Largest lane-dense feature tile whose double-buffered working set fits."""
    budget = phys_vmem // 2

    def working_set(bn: int) -> int:
        pipelined = (S * H_in + H_in * bn + bn + new_S * bn) * itemsize
        interm = S * bn * 4 + new_S * bn * itemsize     # f32 y + wrapped value
        return 2 * pipelined + interm

    for cand in (512, 256, 128):
        if h_pad % cand == 0 and working_set(cand) <= budget:
            return cand
    return 128


def seamless_linear(x: jax.Array, weight: jax.Array, bias: jax.Array) -> jax.Array:
    """x: (B, S, H_in), weight: (H_out, H_in) [torch layout], bias: (H_out,).

    Returns (B, (isqrt(S)+2)**2, H_out).
    """
    B, S, H_in = x.shape
    H_out = weight.shape[0]
    s = math.isqrt(S)
    assert s * s == S, "seq_len must be a perfect square for seamless wrapping"
    new_S = (s + 2) ** 2

    # Pad the output-feature dim to a multiple of 128 so every output store is
    # lane-dense and unmasked (pure layout plumbing outside the kernel).
    H_pad = ((H_out + 127) // 128) * 128
    wt = weight.T                                              # (H_in, H_out), transposed ONCE
    bias_p = bias
    if H_pad != H_out:
        wt = jnp.pad(wt, ((0, 0), (0, H_pad - H_out)))
        bias_p = jnp.pad(bias, (0, H_pad - H_out))
    bias2d = bias_p.reshape(1, H_pad)

    itemsize = jnp.dtype(x.dtype).itemsize
    phys_vmem = _phys_vmem_bytes()
    block_n = _pick_block_n(H_pad, S, H_in, new_S, itemsize, phys_vmem)
    n_tiles = H_pad // block_n

    # VMEM limit from the real double-buffered demand, capped per generation:
    # ~112 MiB on 128 MiB parts (v5e/v6e), 48 MiB on 64 MiB parts (v7x).
    pipelined = (S * H_in + H_in * block_n + block_n + new_S * block_n) * itemsize
    interm = S * block_n * 4 + new_S * block_n * itemsize
    needed = 2 * pipelined + interm + (8 << 20)
    cap = (112 << 20) if phys_vmem >= (100 << 20) else (48 << 20)
    vmem_limit = int(min(max(needed, 32 << 20), cap))

    kernel = _make_kernel(s)

    if n_tiles >= 2:
        # Weight/bias tile index constant over the inner batch sweep -> Pallas
        # keeps them resident in VMEM; only the small x block streams per step.
        # Leading "parallel" axis n_tiles is shardable across v7x's 2 TCs.
        grid = (n_tiles, B)
        in_specs = [
            pl.BlockSpec((1, S, H_in), lambda n, b: (b, 0, 0)),        # activations (streamed)
            pl.BlockSpec((H_in, block_n), lambda n, b: (0, n)),        # W.T tile (resident over b)
            pl.BlockSpec((1, block_n), lambda n, b: (0, n)),           # bias tile (resident over b)
        ]
        out_specs = pl.BlockSpec((1, new_S, block_n), lambda n, b: (b, 0, n))
    else:
        # Single feature tile: weight is trivially resident; put B leading so
        # the leading parallel axis still has extent > 1 for megacore sharding.
        grid = (B, n_tiles)
        in_specs = [
            pl.BlockSpec((1, S, H_in), lambda b, n: (b, 0, 0)),
            pl.BlockSpec((H_in, block_n), lambda b, n: (0, n)),
            pl.BlockSpec((1, block_n), lambda b, n: (0, n)),
        ]
        out_specs = pl.BlockSpec((1, new_S, block_n), lambda b, n: (b, 0, n))

    out = pl.pallas_call(
        kernel,
        out_shape=jax.ShapeDtypeStruct((B, new_S, H_pad), x.dtype),
        grid_spec=pltpu.PrefetchScalarGridSpec(
            num_scalar_prefetch=0,
            grid=grid,
            in_specs=in_specs,
            out_specs=out_specs,
        ),
        compiler_params=pltpu.CompilerParams(
            dimension_semantics=("parallel", "parallel"),
            vmem_limit_bytes=vmem_limit,
        ),
    )(x, wt, bias2d)

    if H_pad != H_out:
        out = out[..., :H_out]
    return out


if __name__ == "__main__":
    B, S, H = 2, 16, 32              # seq_len = 16 -> sqrt_val = 4, hidden = 32
    key = jax.random.PRNGKey(0)
    kx, kw, kb = jax.random.split(key, 3)

    x = jax.random.normal(kx, (B, S, H), dtype=jnp.float32)
    # torch.nn.Linear-shaped parameters: weight (out, in), bias (out,)
    bound = 1.0 / math.sqrt(H)
    weight = jax.random.uniform(kw, (H, H), minval=-bound, maxval=bound, dtype=jnp.float32)
    bias = jax.random.uniform(kb, (H,), minval=-bound, maxval=bound, dtype=jnp.float32)

    out = seamless_linear(x, weight, bias)
    out = jax.block_until_ready(out)

    # Pure-JAX reference (mirrors the PyTorch module).
    s = math.isqrt(S)
    y_ref = x @ weight.T + bias                                    # (B, S, H)
    yg = y_ref.reshape(B, s, s, H)
    yw = jnp.concatenate([yg[:, :, -1:], yg, yg[:, :, :1]], axis=2)
    yw = jnp.concatenate([yw[:, -1:], yw, yw[:, :1]], axis=1)
    ref = yw.reshape(B, (s + 2) ** 2, H)

    assert out.shape == (B, (s + 2) ** 2, H)
    assert jnp.allclose(out, ref, atol=1e-5, rtol=1e-5)
    print("KERNEL_OK")
</pallas_src>

<mosaic_0001>
module attributes {stable_mosaic.version = 11 : i64} {
  func.func @kernel(%arg0: i32, %arg1: i32, %arg2: memref<1x16x32xf32, #tpu.memory_space<vmem>>, %arg3: memref<32x128xf32, #tpu.memory_space<vmem>>, %arg4: memref<1x128xf32, #tpu.memory_space<vmem>>, %arg5: memref<1x36x128xf32, #tpu.memory_space<vmem>>) attributes {dimension_semantics = [#tpu.dimension_semantics<parallel>, #tpu.dimension_semantics<parallel>], iteration_bounds = array<i64: 2, 1>, scalar_prefetch = 0 : i64, scratch_operands = 0 : i64, tpu.core_type = #tpu.core_type<tc>, window_params = [{transform_indices = @transform_0, window_bounds = array<i64: 1, 16, 32>}, {transform_indices = @transform_1, window_bounds = array<i64: 32, 128>}, {transform_indices = @transform_2, window_bounds = array<i64: 1, 128>}, {transform_indices = @transform_3, window_bounds = array<i64: 1, 36, 128>}]} {
    %c0 = arith.constant 0 : index
    %c0_0 = arith.constant 0 : index
    %c0_1 = arith.constant 0 : index
    %0 = vector.load %arg2[%c0, %c0_0, %c0_1] : memref<1x16x32xf32, #tpu.memory_space<vmem>>, vector<1x16x32xf32>
    %1 = vector.shape_cast %0 : vector<1x16x32xf32> to vector<16x32xf32>
    %c0_2 = arith.constant 0 : index
    %c0_3 = arith.constant 0 : index
    %2 = vector.load %arg3[%c0_2, %c0_3] : memref<32x128xf32, #tpu.memory_space<vmem>>, vector<32x128xf32>
    %cst = arith.constant dense<0.000000e+00> : vector<16x128xf32>
    %3 = tpu.matmul %1, %2, %cst {dimension_numbers = #tpu.dot_dimension_numbers<[1], [0], [0], [1], [0, 0, 1, 1], [], []>} : vector<16x32xf32>, vector<32x128xf32>, vector<16x128xf32> -> vector<16x128xf32>
    %c0_4 = arith.constant 0 : index
    %c0_5 = arith.constant 0 : index
    %4 = vector.load %arg4[%c0_4, %c0_5] : memref<1x128xf32, #tpu.memory_space<vmem>>, vector<1x128xf32>
    %5 = vector.broadcast %4 : vector<1x128xf32> to vector<16x128xf32>
    %6 = arith.addf %3, %5 : vector<16x128xf32>
    %7 = vector.extract_strided_slice %6 {offsets = [15, 0], sizes = [1, 128], strides = [1, 1]} : vector<16x128xf32> to vector<1x128xf32>
    %8 = vector.extract_strided_slice %6 {offsets = [12, 0], sizes = [4, 128], strides = [1, 1]} : vector<16x128xf32> to vector<4x128xf32>
    %9 = vector.extract_strided_slice %6 {offsets = [12, 0], sizes = [1, 128], strides = [1, 1]} : vector<16x128xf32> to vector<1x128xf32>
    %10 = vector.extract_strided_slice %6 {offsets = [3, 0], sizes = [1, 128], strides = [1, 1]} : vector<16x128xf32> to vector<1x128xf32>
    %11 = vector.extract_strided_slice %6 {offsets = [0, 0], sizes = [4, 128], strides = [1, 1]} : vector<16x128xf32> to vector<4x128xf32>
    %12 = vector.extract_strided_slice %6 {offsets = [0, 0], sizes = [1, 128], strides = [1, 1]} : vector<16x128xf32> to vector<1x128xf32>
    %13 = vector.extract_strided_slice %6 {offsets = [7, 0], sizes = [1, 128], strides = [1, 1]} : vector<16x128xf32> to vector<1x128xf32>
    %14 = vector.extract_strided_slice %6 {offsets = [4, 0], sizes = [4, 128], strides = [1, 1]} : vector<16x128xf32> to vector<4x128xf32>
    %15 = vector.extract_strided_slice %6 {offsets = [4, 0], sizes = [1, 128], strides = [1, 1]} : vector<16x128xf32> to vector<1x128xf32>
    %16 = vector.extract_strided_slice %6 {offsets = [11, 0], sizes = [1, 128], strides = [1, 1]} : vector<16x128xf32> to vector<1x128xf32>
    %17 = vector.extract_strided_slice %6 {offsets = [8, 0], sizes = [4, 128], strides = [1, 1]} : vector<16x128xf32> to vector<4x128xf32>
    %18 = vector.extract_strided_slice %6 {offsets = [8, 0], sizes = [1, 128], strides = [1, 1]} : vector<16x128xf32> to vector<1x128xf32>
    %19 = vector.extract_strided_slice %6 {offsets = [15, 0], sizes = [1, 128], strides = [1, 1]} : vector<16x128xf32> to vector<1x128xf32>
    %20 = vector.extract_strided_slice %6 {offsets = [12, 0], sizes = [4, 128], strides = [1, 1]} : vector<16x128xf32> to vector<4x128xf32>
    %21 = vector.extract_strided_slice %6 {offsets = [12, 0], sizes = [1, 128], strides = [1, 1]} : vector<16x128xf32> to vector<1x128xf32>
    %22 = vector.extract_strided_slice %6 {offsets = [3, 0], sizes = [1, 128], strides = [1, 1]} : vector<16x128xf32> to vector<1x128xf32>
    %23 = vector.extract_strided_slice %6 {offsets = [0, 0], sizes = [4, 128], strides = [1, 1]} : vector<16x128xf32> to vector<4x128xf32>
    %24 = vector.extract_strided_slice %6 {offsets = [0, 0], sizes = [1, 128], strides = [1, 1]} : vector<16x128xf32> to vector<1x128xf32>
    %25 = tpu.concatenate %7, %8, %9, %10, %11, %12, %13, %14, %15, %16, %17, %18, %19, %20, %21, %22 in 0 : vector<1x128xf32>, vector<4x128xf32>, vector<1x128xf32>, vector<1x128xf32>, vector<4x128xf32>, vector<1x128xf32>, vector<1x128xf32>, vector<4x128xf32>, vector<1x128xf32>, vector<1x128xf32>, vector<4x128xf32>, vector<1x128xf32>, vector<1x128xf32>, vector<4x128xf32>, vector<1x128xf32>, vector<1x128xf32> -> vector<31x128xf32>
    %26 = tpu.concatenate %23, %24 in 0 : vector<4x128xf32>, vector<1x128xf32> -> vector<5x128xf32>
    %27 = tpu.concatenate %25, %26 in 0 : vector<31x128xf32>, vector<5x128xf32> -> vector<36x128xf32>
    %c0_6 = arith.constant 0 : index
    %c0_7 = arith.constant 0 : index
    %c0_8 = arith.constant 0 : index
    %28 = vector.load %arg5[%c0_6, %c0_7, %c0_8] : memref<1x36x128xf32, #tpu.memory_space<vmem>>, vector<1x36x128xf32>
    %29 = vector.shape_cast %28 : vector<1x36x128xf32> to vector<36x128xf32>
    %30 = vector.shape_cast %27 : vector<36x128xf32> to vector<1x36x128xf32>
    tpu.vector_store %arg5[%c0_6, %c0_7, %c0_8], %30 {strides = array<i32>} : memref<1x36x128xf32, #tpu.memory_space<vmem>>, vector<1x36x128xf32>,
    return
  }
  func.func @transform_0(%arg0: i32, %arg1: i32) -> (i32, i32, i32) {
    %c0_i32 = arith.constant 0 : i32
    %c0_i32_0 = arith.constant 0 : i32
    %c0_i32_1 = arith.constant 0 : i32
    return %arg0, %c0_i32, %c0_i32_0 : i32, i32, i32
  }
  func.func @transform_1(%arg0: i32, %arg1: i32) -> (i32, i32) {
    %c0_i32 = arith.constant 0 : i32
    %c0_i32_0 = arith.constant 0 : i32
    return %c0_i32, %arg1 : i32, i32
  }
  func.func @transform_2(%arg0: i32, %arg1: i32) -> (i32, i32) {
    %c0_i32 = arith.constant 0 : i32
    %c0_i32_0 = arith.constant 0 : i32
    return %c0_i32, %arg1 : i32, i32
  }
  func.func @transform_3(%arg0: i32, %arg1: i32) -> (i32, i32, i32) {
    %c0_i32 = arith.constant 0 : i32
    %c0_i32_0 = arith.constant 0 : i32
    return %arg0, %c0_i32, %arg1 : i32, i32, i32
  }
}

</mosaic_0001>

<llo_original>
// kernel: tpu_custom_call.1
$region0: #{tpu_custom_call.1}
  #allocation0 [shape = 'u32[]', space=smem, size = 0x4, offset = 0x4, fixed_abs, tag = 'smem constant byte address 0x4 - core index']
  #allocation1 [shape = 'u32[144,128]{1,0:T(1,128)}', space=vmem, size = 0x12000, scoped, tag = 'internal scratch']
  %s0 = inlined_call_operand.hbm [shape: f32[2,16,32], index: 0, kind: input, shape index: {}]
  %s1 = inlined_call_operand.hbm [shape: f32[32,128], index: 1, kind: input, shape index: {}]
  %s2 = inlined_call_operand.vmem [shape: f32[1,128], index: 2, kind: input, shape index: {}]
  %s3 = inlined_call_operand.vmem [shape: f32[2,36,128], index: 3, kind: output, shape index: {}]
  %s4 = sld [smem:[#allocation0]]
  $region53: #{tpu_custom_call.1} parent=0
    _
  %s6 = ssub.s32 1, %s4
  %s7 = scalar_select 0, %s6, %s4
  $region1: #{tpu_custom_call.1} parent=0
    #allocation2 [shape = 'u8[16384]{0}', space=vmem, size = 0x4000, scoped, tag = 'input window, operand 0']
    #allocation3 [shape = 's32[2]{0}', space=sflag, size = 0x8, scoped, tag = 'scoped memory for tpu_custom_call.1']
    #allocation4 [shape = 'u8[16384]{0}', space=vmem, size = 0x4000, scoped, tag = 'input window, operand 1, single buffered']
    #allocation5 [shape = 's32[1]{0}', space=sflag, size = 0x4, scoped, tag = 'scoped memory for tpu_custom_call.1']
    %8 = vsyncpa [#allocation3], 0
    %s9 = scalar_lea.sflag [#allocation3], 1
    %10 = vsyncpa %s9, 0
    %11 = vsyncpa [#allocation5], 0
    loop: start=0, step=1, limit=4
    $region2: #{tpu_custom_call.1} parent=1 // loop_pre_header
      _
    $region3: #{tpu_custom_call.1} parent=1 // loop_header
      %s13 = sphi 0, %s17
      %p14 = scmp.ge.s32.totalorder %s13, 4
      %s20 = sphi 0, %s32
      %s21 = sphi 0, %s28
      %s22 = sphi 0, %s20
      %s23 = sphi 0, %s21
      %s24 = sphi 0, %s22
      %s25 = sphi 0, %s23
      %s35 = sphi 0, %s37
      %s38 = sphi 0, %s35
      %s39 = sphi 0, %s38
      %s55 = sphi 0, %s39
      %s61 = sphi 0, %s63
      %s64 = sphi 0, %s61
      %s65 = sphi 0, %s64
      %s81 = sphi 0, %s65
      %s87 = sphi 0, %s89
      %s90 = sphi 0, %s87
      %s91 = sphi 0, %s90
      %s107 = sphi 0, %s91
      %s115 = sphi 0, %s117
      %s118 = sphi 0, %s115
      %s119 = sphi 0, %s118
      %s135 = sphi 0, %s119
    $region4: #{tpu_custom_call.1} parent=1 // loop_header_branch
      %16 = sbr.rel (%p14) target = $region8
    $region5: #{tpu_custom_call.1} parent=1 // loop_body
      %s18 = ssub.s32 %s13, 1
      %s19 = ssub.s32 %s13, 2
      %s26 = sadd.s32 1, %s21
      %p27 = scmp.ge.s32.totalorder %s26, 1
      %s28 = scalar_select %p27, 0, %s26
      %s29 = sadd.s32 1, %s20
      %s30 = scalar_select %p27, %s29, %s20
      %p31 = scmp.ge.s32.totalorder %s30, 2
      %s32 = scalar_select %p31, 0, %s30
      %s33 = ssub.s32 %s20, %s32
      %p34 = scmp.eq.s32.totalorder %s33, 0
      %s36 = sadd.s32 %s35, 1
      %s37 = scalar_select %p34, %s35, %s36
      %p40 = pneg %p34
      %p41 = scmp.eq.s32.totalorder %s13, 1
      %p42 = por %p40, %p41
      %p43 = scmp.ne.s32.totalorder %s35, %s38
      %p44 = scmp.eq.s32.totalorder %s13, 0
      %p45 = por %p43, %p44
      %p46 = scmp.ne.s32.totalorder %s35, %s38
      %p47 = scmp.eq.s32.totalorder %s18, 1
      %p48 = por %p46, %p47
      %p49 = scmp.ne.s32.totalorder %s38, %s39
      %p50 = scmp.eq.s32.totalorder %s18, 0
      %p51 = por %p49, %p50
      %p52 = scmp.ne.s32.totalorder %s38, %s39
      %p53 = scmp.eq.s32.totalorder %s19, 1
      %p54 = por %p52, %p53
      %p56 = scmp.ne.s32.totalorder %s39, %s55
      %p57 = scmp.eq.s32.totalorder %s19, 0
      %p58 = por %p56, %p57
      %s59 = ssub.s32 %s21, %s28
      %p60 = scmp.eq.s32.totalorder %s59, 0
      %s62 = sadd.s32 %s61, 1
      %s63 = scalar_select %p60, %s61, %s62
      %p66 = pneg %p60
      %p67 = scmp.eq.s32.totalorder %s13, 1
      %p68 = por %p66, %p67
      %p69 = scmp.ne.s32.totalorder %s61, %s64
      %p70 = scmp.eq.s32.totalorder %s13, 0
      %p71 = por %p69, %p70
      %p72 = scmp.ne.s32.totalorder %s61, %s64
      %p73 = scmp.eq.s32.totalorder %s18, 1
      %p74 = por %p72, %p73
      %p75 = scmp.ne.s32.totalorder %s64, %s65
      %p76 = scmp.eq.s32.totalorder %s18, 0
      %p77 = por %p75, %p76
      %p78 = scmp.ne.s32.totalorder %s64, %s65
      %p79 = scmp.eq.s32.totalorder %s19, 1
      %p80 = por %p78, %p79
      %p82 = scmp.ne.s32.totalorder %s65, %s81
      %p83 = scmp.eq.s32.totalorder %s19, 0
      %p84 = por %p82, %p83
      %s85 = ssub.s32 %s21, %s28
      %p86 = scmp.eq.s32.totalorder %s85, 0
      %s88 = sadd.s32 %s87, 1
      %s89 = scalar_select %p86, %s87, %s88
      %p92 = pneg %p86
      %p93 = scmp.eq.s32.totalorder %s13, 1
      %p94 = por %p92, %p93
      %p95 = scmp.ne.s32.totalorder %s87, %s90
      %p96 = scmp.eq.s32.totalorder %s13, 0
      %p97 = por %p95, %p96
      %p98 = scmp.ne.s32.totalorder %s87, %s90
      %p99 = scmp.eq.s32.totalorder %s18, 1
      %p100 = por %p98, %p99
      %p101 = scmp.ne.s32.totalorder %s90, %s91
      %p102 = scmp.eq.s32.totalorder %s18, 0
      %p103 = por %p101, %p102
      %p104 = scmp.ne.s32.totalorder %s90, %s91
      %p105 = scmp.eq.s32.totalorder %s19, 1
      %p106 = por %p104, %p105
      %p108 = scmp.ne.s32.totalorder %s91, %s107
      %p109 = scmp.eq.s32.totalorder %s19, 0
      %p110 = por %p108, %p109
      %s111 = ssub.s32 %s20, %s32
      %s112 = ssub.s32 %s21, %s28
      %s113 = sor.u32 %s111, %s112
      %p114 = scmp.eq.s32.totalorder %s113, 0
      %s116 = sadd.s32 %s115, 1
      %s117 = scalar_select %p114, %s115, %s116
      %p120 = pneg %p114
      %p121 = scmp.eq.s32.totalorder %s13, 1
      %p122 = por %p120, %p121
      %p123 = scmp.ne.s32.totalorder %s115, %s118
      %p124 = scmp.eq.s32.totalorder %s13, 0
      %p125 = por %p123, %p124
      %p126 = scmp.ne.s32.totalorder %s115, %s118
      %p127 = scmp.eq.s32.totalorder %s18, 1
      %p128 = por %p126, %p127
      %p129 = scmp.ne.s32.totalorder %s118, %s119
      %p130 = scmp.eq.s32.totalorder %s18, 0
      %p131 = por %p129, %p130
      %p132 = scmp.ne.s32.totalorder %s118, %s119
      %p133 = scmp.eq.s32.totalorder %s19, 1
      %p134 = por %p132, %p133
      %p136 = scmp.ne.s32.totalorder %s119, %s135
      %p137 = scmp.eq.s32.totalorder %s19, 0
      %p138 = por %p136, %p137
      %p139 = scmp.le.s32.totalorder 1, %s13
      %p140 = scmp.lt.s32.totalorder %s13, 3
      %p141 = pnand %p139, %p140
      %p142 = pneg %p141
      // Predicated region
      $region9: #{tpu_custom_call.1} parent=5 // pred_check
        _
      $region10: #{tpu_custom_call.1} parent=5 // pred_check_branch
        %144 = sbr.rel (%p141) target = $region12
      $region11: #{tpu_custom_call.1} parent=5 // pred_region
        %s145 = ssub.s32 %s13, 1
        // Predicated region
        $region13: #{tpu_custom_call.1} parent=11 // pred_check
          %p146 = pneg %p77
        $region14: #{tpu_custom_call.1} parent=11 // pred_check_branch
          %148 = sbr.rel (%p146) target = $region16
        $region15: #{tpu_custom_call.1} parent=11 // pred_region
          %s150 = ssub.s32 512, 512
          %151 = vsyncadd [#allocation5], %s150
          %s152 = smul.addr %s23, 128
          %s153 = scalar_lea.hbm %s1, %s152
          %s154 = sshll.u32 [#allocation4], 4
          %s155 = int_to_ptr.vmem [resolvable:$true] %s154
          %160 = dma.hbm_to_vmem [thread:$0]  %s153, 512, %s155, [#allocation5], 128, 128, 8
        $region16: #{tpu_custom_call.1} parent=11 // pred_fallthru
          _
        // Predicated region
        $region17: #{tpu_custom_call.1} parent=11 // pred_check
          %p161 = pneg %p103
        $region18: #{tpu_custom_call.1} parent=11 // pred_check_branch
          %163 = sbr.rel (%p161) target = $region20
        $region19: #{tpu_custom_call.1} parent=11 // pred_region
          %p164 = scmp.lt.s32.totalorder %s23, 0
          %s165 = scalar_select %p164, %s23, 0
          %s166 = scalar_lea.vmem %s2, %s165
        $region20: #{tpu_custom_call.1} parent=11 // pred_fallthru
          _
      $region12: #{tpu_custom_call.1} parent=5 // pred_fallthru
        _
      %p167 = scmp.lt.s32.totalorder %s13, 2
      // Predicated region
      $region21: #{tpu_custom_call.1} parent=5 // pred_check
        %p168 = pneg %p167
      $region22: #{tpu_custom_call.1} parent=5 // pred_check_branch
        %170 = sbr.rel (%p168) target = $region24
      $region23: #{tpu_custom_call.1} parent=5 // pred_region
        // Predicated region
        $region25: #{tpu_custom_call.1} parent=23 // pred_check
          %p171 = pneg %p45
        $region26: #{tpu_custom_call.1} parent=23 // pred_check_branch
          %173 = sbr.rel (%p171) target = $region28
        $region27: #{tpu_custom_call.1} parent=23 // pred_region
          %s174 = sand.u32 %s35, 1
          %s175 = scalar_lea.sflag [#allocation3], %s174
          %s176 = sand.u32 %s35, 1
          %s177 = smul.addr %s176, 16
          %s178 = scalar_lea.vmem [#allocation2], %s177
          %s180 = ssub.s32 256, 256
          %181 = vsyncadd %s175, %s180
          %s182 = smul.addr %s20, 2
          %s183 = smul.addr %s182, 128
          %s184 = scalar_lea.hbm %s0, %s183
          %s185 = sshll.u32 %s178, 4
          %s186 = int_to_ptr.vmem [resolvable:$true] %s185
          %191 = dma.hbm_to_vmem [thread:$0]  %s184, 256, %s186, %s175, 128, 128, 8
        $region28: #{tpu_custom_call.1} parent=23 // pred_fallthru
          _
      $region24: #{tpu_custom_call.1} parent=5 // pred_fallthru
        _
      %p192 = scmp.le.s32.totalorder 1, %s13
      %p193 = scmp.lt.s32.totalorder %s13, 3
      %p194 = pnand %p192, %p193
      %p195 = pneg %p194
      // Predicated region
      $region29: #{tpu_custom_call.1} parent=5 // pred_check
        _
      $region30: #{tpu_custom_call.1} parent=5 // pred_check_branch
        %197 = sbr.rel (%p194) target = $region32
      $region31: #{tpu_custom_call.1} parent=5 // pred_region
        %s198 = ssub.s32 %s13, 1
        %s199 = sand.u32 %s38, 1
        %s200 = scalar_lea.sflag [#allocation3], %s199
        %s201 = sand.u32 %s38, 1
        %s202 = smul.addr %s201, 16
        %s203 = scalar_lea.vmem [#allocation2], %s202
        // Predicated region
        $region33: #{tpu_custom_call.1} parent=31 // pred_check
          %p204 = pneg %p51
        $region34: #{tpu_custom_call.1} parent=31 // pred_check_branch
          %206 = sbr.rel (%p204) target = $region36
        $region35: #{tpu_custom_call.1} parent=31 // pred_region
          %207 = dma.done %s200, 256
        $region36: #{tpu_custom_call.1} parent=31 // pred_fallthru
          _
        // Predicated region
        $region37: #{tpu_custom_call.1} parent=31 // pred_check
          %p208 = pneg %p77
        $region38: #{tpu_custom_call.1} parent=31 // pred_check_branch
          %210 = sbr.rel (%p208) target = $region40
        $region39: #{tpu_custom_call.1} parent=31 // pred_region
          %211 = dma.done [#allocation5], 512
        $region40: #{tpu_custom_call.1} parent=31 // pred_fallthru
          _
        %s212 = sand.u32 %s38, 1
        %s213 = scalar_lea.sflag [#allocation3], %s212
        %s214 = sand.u32 %s38, 1
        %s215 = smul.addr %s214, 16
        %s216 = scalar_lea.vmem [#allocation2], %s215
        %p217 = pneg %p51
        %p218 = pneg %p48
        %p219 = pneg %p77
        %p220 = pneg %p74
        %p221 = scmp.lt.s32.totalorder %s23, 0
        %s222 = scalar_select %p221, %s23, 0
        %s223 = scalar_lea.vmem %s2, %s222
        %p224 = pneg %p103
        %p225 = pneg %p100
        %p226 = pneg %p131
        %p227 = pneg %p128
        %p228 = scmp.lt.s32.totalorder %s22, 1
        %s229 = scalar_select %p228, %s22, 1
        %p230 = scmp.lt.s32.totalorder %s23, 0
        %s231 = scalar_select %p230, %s23, 0
        %s232 = smul.addr %s229, 5
        %s233 = sadd.s32 %s231, %s232
        %s234 = smul.addr %s233, 8
        %s235 = scalar_lea.vmem %s3, %s234
        %p236 = scmp.lt.s32.totalorder %s23, 0
        %s237 = scalar_select %p236, %s23, 0
        %s238 = scalar_lea.vmem %s2, %s237
        %p239 = scmp.lt.s32.totalorder %s22, 1
        %s240 = scalar_select %p239, %s22, 1
        %p241 = scmp.lt.s32.totalorder %s23, 0
        %s242 = scalar_select %p241, %s23, 0
        %s243 = smul.addr %s240, 5
        %s244 = sadd.s32 %s242, %s243
        %s245 = smul.addr %s244, 8
        %s246 = scalar_lea.vmem %s3, %s245
        %v247 = vld [vmem:[%s203] sm:$0xff]
        %v248 = vld [vmem:[%s203 + $0x8] sm:$0xff]
        %v249 = vld [vmem:[#allocation4] sm:$0xff]
        %v250 = vld [vmem:[#allocation4 + $0x8] sm:$0xff]
        %v251 = vld [vmem:[#allocation4 + $0x10] sm:$0xff]
        %v252 = vld [vmem:[#allocation4 + $0x18] sm:$0xff]
        %v253 = vld [vmem:[%s238] sm:$0x1]
        %v255 = vlaneseq
        %v256 = vshrl.u32 %v255, 7
        %v257 = vsub.s32 0, %v256
        %v258 = vrot.slane %v253, %v257
        %vm260 = vcmask 261120
        %v262 = vsel %vm260, %v247, 0
        %v265 = vsel %vm260, %v248, 0
        %267 = vmatprep.subr.mxu0 0.0
        %268 = vmatpush1.msra.mxu0 %v249
        %269 = vmatprep.subr.mxu0 0.0
        %270 = vmatpush1.msra.mxu0 %v250
        %271 = vmatprep.subr.mxu0 0.0
        %272 = vmatpush1.msra.mxu0 %v251
        %273 = vmatprep.subr.mxu0 0.0
        %274 = vmatpush1.msra.mxu0 %v252
        %275 = vmatprep.subr.mxu0 0.0
        %276 = vmatpush1.msra.mxu0 0.0
        %277 = vmatprep.subr.mxu0 0.0
        %278 = vmatpush1.msra.mxu0 0.0
        %279 = vmatprep.subr.mxu0 0.0
        %280 = vmatpush1.msra.mxu0 0.0
        %281 = vmatprep.subr.mxu0 0.0
        %282 = vmatpush1.msra.mxu0 0.0
        %283 = vmatprep.subr.mxu0 0.0
        %284 = vmatpush1.msra.mxu0 0.0
        %285 = vmatprep.subr.mxu0 0.0
        %286 = vmatpush1.msra.mxu0 0.0
        %287 = vmatprep.subr.mxu0 0.0
        %288 = vmatpush1.msra.mxu0 0.0
        %289 = vmatprep.subr.mxu0 0.0
        %290 = vmatpush1.msra.mxu0 0.0
        %291 = vmatprep.subr.mxu0 0.0
        %292 = vmatpush1.msra.mxu0 0.0
        %293 = vmatprep.subr.mxu0 0.0
        %294 = vmatpush1.msra.mxu0 0.0
        %295 = vmatprep.subr.mxu0 0.0
        %296 = vmatpush1.msra.mxu0 0.0
        %297 = vmatprep.subr.mxu0 0.0
        %298 = vmatpush1.msra.mxu0 0.0
        %299 = vmatprep.subr.mxu0 0.0
        %300 = vmatpush1.msra.mxu0 0.0
        %301 = vmatprep.subr.mxu0 0.0
        %302 = vmatpush1.msra.mxu0 0.0
        %303 = vmatprep.subr.mxu0 0.0
        %304 = vmatpush1.msra.mxu0 0.0
        %305 = vmatprep.subr.mxu0 0.0
        %306 = vmatpush1.msra.mxu0 0.0
        %307 = vmatprep.subr.mxu0 0.0
        %308 = vmatpush1.msra.mxu0 0.0
        %309 = vmatprep.subr.mxu0 0.0
        %310 = vmatpush1.msra.mxu0 0.0
        %311 = vmatprep.subr.mxu0 0.0
        %312 = vmatpush1.msra.mxu0 0.0
        %313 = vmatprep.subr.mxu0 0.0
        %314 = vmatpush1.msra.mxu0 0.0
        %315 = vmatprep.subr.mxu0 0.0
        %316 = vmatpush1.msra.mxu0 0.0
        %317 = vmatprep.subr.mxu0 0.0
        %318 = vmatpush1.msra.mxu0 0.0
        %319 = vmatprep.subr.mxu0 0.0
        %320 = vmatpush1.msra.mxu0 0.0
        %321 = vmatprep.subr.mxu0 0.0
        %322 = vmatpush1.msra.mxu0 0.0
        %323 = vmatprep.subr.mxu0 0.0
        %324 = vmatpush1.msra.mxu0 0.0
        %325 = vmatprep.subr.mxu0 0.0
        %326 = vmatpush1.msra.mxu0 0.0
        %327 = vmatprep.subr.mxu0 0.0
        %328 = vmatpush1.msra.mxu0 0.0
        %329 = vmatprep.subr.mxu0 0.0
        %330 = vmatpush1.msra.mxu0 0.0
        %331 = vmatprep.mubr.f32.mxu0 0.0
        %332 = vmatmul.mubr.f32.gmra.mrb[0].mxu0 %v262
        %v333 = vpop.f32.mrb[0].mxu0
        %v334 = vadd.f32 %v258, %v333
        %v335 = vpop.f32.mrb[0].mxu0
        %336 = vmatprep.mubr.f32.mxu0 0.0
        %337 = vmatmul.mubr.f32.gmra.mrb[0].mxu0 %v265
        %v338 = vpop.f32.mrb[0].mxu0
        %v339 = vadd.f32 %v258, %v338
        %v340 = vpop.f32.mrb[0].mxu0
        %341 = vdwg.mxu0
        %v343 = vrot.slane %v339, 7
        %v345 = vrot.slane %v339, 3
        %v348 = vrot.slane %v334, 5
        %v350 = vrot.slane %v334, 1
        %v352 = vrot.slane %v334, 3
        %v354 = vrot.slane %v334, 7
        %v356 = vrot.slane %v339, 1
        %v358 = vrot.slane %v339, 5
        %vm360 = vcmask 1040384
        %v361 = vsel %vm360, %v343, %v345
        %vm362 = vcmask 1044480
        %v363 = vsel %vm362, %v361, %v343
        %vm364 = vcmask 1045504
        %v365 = vsel %vm364, %v363, %v348
        %vm366 = vcmask 1046528
        %v367 = vsel %vm366, %v365, %v350
        %vm368 = vcmask 1042432
        %v369 = vsel %vm368, %v350, %v348
        %vm370 = vcmask 1043456
        %v371 = vsel %vm370, %v369, %v352
        %v372 = vsel %vm362, %v371, %v354
        %v373 = vsel %vm360, %v354, %v352
        %vm374 = vcmask 1041408
        %v375 = vsel %vm374, %v373, %v356
        %v376 = vsel %vm368, %v375, %v358
        %v377 = vsel %vm366, %v376, %v356
        %v378 = vrot.slane %v334, 4
        %v380 = vsel %vm370, %v334, %v378
        %v382 = vrot.slane %v380, 1
        %v384 = vsel %vm366, %v365, %v382
        %385 = vst [vmem:[%s246] sm:$0xff] %v367
        %386 = vst [vmem:[%s246 + $0x8] sm:$0xff] %v372
        %387 = vst [vmem:[%s246 + $0x10] sm:$0xff] %v377
        %388 = vst [vmem:[%s246 + $0x18] sm:$0xff] %v384
        %389 = vst [vmem:[%s246 + $0x20] sm:$0xf] %v382
        %p390 = scmp.lt.s32.totalorder %s22, 1
        %s391 = scalar_select %p390, %s22, 1
        %p392 = scmp.lt.s32.totalorder %s23, 0
        %s393 = scalar_select %p392, %s23, 0
        %s394 = smul.addr %s391, 5
        %s395 = sadd.s32 %s393, %s394
        %s396 = smul.addr %s395, 8
        %s397 = scalar_lea.vmem %s3, %s396
        // Predicated region
        $region41: #{tpu_custom_call.1} parent=31 // pred_check
          %p398 = pneg %p128
        $region42: #{tpu_custom_call.1} parent=31 // pred_check_branch
          %400 = sbr.rel (%p398) target = $region44
        $region43: #{tpu_custom_call.1} parent=31 // pred_region
          _
        $region44: #{tpu_custom_call.1} parent=31 // pred_fallthru
          _
      $region32: #{tpu_custom_call.1} parent=5 // pred_fallthru
        _
      %p401 = scmp.le.s32.totalorder 2, %s13
      // Predicated region
      $region45: #{tpu_custom_call.1} parent=5 // pred_check
        %p402 = pneg %p401
      $region46: #{tpu_custom_call.1} parent=5 // pred_check_branch
        %404 = sbr.rel (%p402) target = $region48
      $region47: #{tpu_custom_call.1} parent=5 // pred_region
        %s405 = ssub.s32 %s13, 2
        // Predicated region
        $region49: #{tpu_custom_call.1} parent=47 // pred_check
          %p406 = pneg %p134
        $region50: #{tpu_custom_call.1} parent=47 // pred_check_branch
          %408 = sbr.rel (%p406) target = $region52
        $region51: #{tpu_custom_call.1} parent=47 // pred_region
          %p409 = scmp.lt.s32.totalorder %s24, 1
          %s410 = scalar_select %p409, %s24, 1
          %p411 = scmp.lt.s32.totalorder %s25, 0
          %s412 = scalar_select %p411, %s25, 0
          %s413 = smul.addr %s410, 5
          %s414 = sadd.s32 %s412, %s413
          %s415 = smul.addr %s414, 8
          %s416 = scalar_lea.vmem %s3, %s415
        $region52: #{tpu_custom_call.1} parent=47 // pred_fallthru
          _
      $region48: #{tpu_custom_call.1} parent=5 // pred_fallthru
        _
    $region6: #{tpu_custom_call.1} parent=1 // loop_footer
      %s17 = sadd.s32 1, %s13
    $region7: #{tpu_custom_call.1} parent=1 // loop_footer_branch
      %12 = sbr.rel target = $region3
    $region8: #{tpu_custom_call.1} parent=1 // loop_exit
      _
    %417 = vsyncpa [#allocation3], 1
    %s418 = scalar_lea.sflag [#allocation3], 1
    %419 = vsyncpa %s418, 1
    %420 = vsyncpa [#allocation5], 1

</llo_original>
